<compile_context>
chip_gen: v6e
topology: v6e:2x2x1
jax: 0.10.0
libtpu: 0.0.40
codegen_flags: <defaults>
</compile_context>

<pallas_src>
import jax
import jax.numpy as jnp
from jax.experimental import pallas as pl
from jax.experimental.pallas import tpu as pltpu


def _round_up(x, m):
    return ((x + m - 1) // m) * m


def _vmem_capacity_bytes():
    """Physical per-core VMEM; falls back to the smallest current part (v7x, 64 MiB)."""
    try:
        info = pltpu.get_tpu_info()
        cap = getattr(info, "vmem_capacity_bytes", None)
        if cap:
            return int(cap)
    except Exception:
        pass
    return 64 << 20


def _cls_kernel(x_ref, w1_ref, b1_ref, w2_ref, b2_ref, wp_ref, feat_ref, out_ref):
    bf16 = jnp.bfloat16

    # ---- projection head: Linear -> ReLU -> Linear (bf16 MXU, f32 acc) -----
    x = x_ref[...].astype(bf16)
    h = jnp.dot(x, w1_ref[...], preferred_element_type=jnp.float32)
    h = jnp.maximum(h + b1_ref[...], 0.0)

    feat = jnp.dot(h.astype(bf16), w2_ref[...], preferred_element_type=jnp.float32)
    feat = feat + b2_ref[...]
    # Same block index across the out-tile grid axis -> feat stays resident in
    # VMEM and is written back to HBM only once per batch tile.
    feat_ref[...] = feat.astype(feat_ref.dtype)

    # ---- ProtoCLS: F.normalize(feat, dim=1, eps=1e-12) @ (Wp / temp) --------
    # x * rsqrt(max(sum(x^2), eps^2)) == x / max(||x||, eps)   (EUP rsqrt)
    ss = jnp.sum(feat * feat, axis=-1, keepdims=True)
    inv_norm = jax.lax.rsqrt(jnp.maximum(ss, 1e-24))
    normalized = (feat * inv_norm).astype(bf16)

    # wp_ref already carries the 1/temp scaling (folded in the wrapper).
    out_ref[...] = jnp.dot(normalized, wp_ref[...],
                           preferred_element_type=jnp.float32).astype(out_ref.dtype)


def _pick_tiles(padded_b, in_p, hid_p, feat_p, out_p, budget_bytes):
    """Choose (tm, tn): batch tile and out-dim tile for the prototype matmul."""
    # Resident single-buffered operands: bf16 w1/w2, f32 biases.
    fixed = 2 * (in_p * hid_p + hid_p * feat_p) + 4 * (hid_p + feat_p)

    # Prototype matrix: keep it fully resident (single-buffered) when it fits,
    # otherwise tile it along out_dim (double-buffered while streaming).
    tn = out_p

    def wp_bytes(t):
        nbuf = 1 if t >= out_p else 2
        return nbuf * 2 * feat_p * t

    while tn > 128 and fixed + wp_bytes(tn) > budget_bytes // 2:
        tn = max(128, _round_up(tn // 2, 128))

    # Batch tile: as large as the budget allows, multiple of 16 (bf16 sublane
    # packing), split in two when the batch permits so both v7x cores get work.
    tm = min(1024, padded_b)
    if padded_b >= 32:
        tm = min(tm, padded_b // 2)
    tm = max(16, (tm // 16) * 16)
    while True:
        stream = 2 * 4 * tm * (in_p + feat_p + tn)       # double-buffered x/feat/out (f32 worst case)
        scratch = 4 * tm * (hid_p + 2 * feat_p + tn)     # live f32 intermediates
        scratch += 2 * tm * max(hid_p, feat_p)           # bf16 casts
        if fixed + wp_bytes(tn) + stream + scratch <= budget_bytes or tm <= 16:
            break
        tm = max(16, ((tm // 2) // 16) * 16)
    return tm, tn


def cls_forward(x, w1, b1, w2, b2, w_proto, temp):
    """x: (B, in_dim). Weights stored transposed: (in_features, out_features).
    Returns (before_lincls_feat (B, feat_dim), after_lincls (B, out_dim))."""
    B, in_dim = x.shape
    hidden = w1.shape[1]
    feat_dim = w2.shape[1]
    out_dim = w_proto.shape[1]

    f32, bf16 = jnp.float32, jnp.bfloat16

    # --- lane-dense padding targets ------------------------------------------
    in_p = _round_up(in_dim, 128)
    hid_p = _round_up(hidden, 128)
    feat_p = _round_up(feat_dim, 128)
    out_p = _round_up(out_dim, 128)

    # --- generation-aware VMEM budget ----------------------------------------
    cap = _vmem_capacity_bytes()            # 128 MiB on v5e/v6e, 64 MiB on v7x
    budget = int(cap * 0.70)
    vmem_limit = int(cap * 0.85)

    # --- tiling ----------------------------------------------------------------
    padded_b = _round_up(max(B, 1), 16)
    tm, tn = _pick_tiles(padded_b, in_p, hid_p, feat_p, out_p, budget)
    padded_b = _round_up(padded_b, tm)
    out_pp = _round_up(out_p, tn)
    n_b, n_o = padded_b // tm, out_pp // tn

    # --- operand prep (skip pads when already aligned) -------------------------
    def pad_cast(a, rows, cols, dtype):
        r, c = a.shape
        if (r, c) == (rows, cols):
            return a.astype(dtype)
        return jnp.zeros((rows, cols), dtype).at[:r, :c].set(a.astype(dtype))

    if x.shape == (padded_b, in_p):
        xp = x                                           # no extra HBM pass; kernel casts to bf16
    else:
        xp = jnp.zeros((padded_b, in_p), bf16).at[:B, :in_dim].set(x.astype(bf16))

    w1p = pad_cast(w1, in_p, hid_p, bf16)
    w2p = pad_cast(w2, hid_p, feat_p, bf16)
    b1p = pad_cast(b1.reshape(1, -1), 1, hid_p, f32)
    b2p = pad_cast(b2.reshape(1, -1), 1, feat_p, f32)
    # Fold 1/temp into the prototype weights (one host-side scalar op).
    wpp = pad_cast(w_proto.astype(f32) / jnp.asarray(temp, f32), feat_p, out_pp, bf16)

    single = pl.Buffered(1)   # grid-invariant operands: no double buffer
    if n_o == 1:
        wp_spec = pl.BlockSpec((feat_p, tn), lambda i, j: (0, 0), pipeline_mode=single)
    else:
        wp_spec = pl.BlockSpec((feat_p, tn), lambda i, j: (0, j))

    feat_full, after_full = pl.pallas_call(
        _cls_kernel,
        out_shape=(
            jax.ShapeDtypeStruct((padded_b, feat_p), f32),
            jax.ShapeDtypeStruct((padded_b, out_pp), f32),
        ),
        grid=(n_b, n_o),
        in_specs=[
            pl.BlockSpec((tm, in_p), lambda i, j: (i, 0)),                              # x tile
            pl.BlockSpec((in_p, hid_p), lambda i, j: (0, 0), pipeline_mode=single),     # w1
            pl.BlockSpec((1, hid_p), lambda i, j: (0, 0), pipeline_mode=single),        # b1
            pl.BlockSpec((hid_p, feat_p), lambda i, j: (0, 0), pipeline_mode=single),   # w2
            pl.BlockSpec((1, feat_p), lambda i, j: (0, 0), pipeline_mode=single),       # b2
            wp_spec,                                                                    # Wp / temp
        ],
        out_specs=(
            pl.BlockSpec((tm, feat_p), lambda i, j: (i, 0)),
            pl.BlockSpec((tm, tn), lambda i, j: (i, j)),
        ),
        compiler_params=pltpu.CompilerParams(
            dimension_semantics=("parallel", "arbitrary"),
            vmem_limit_bytes=vmem_limit,
        ),
    )(xp, w1p, b1p, w2p, b2p, wpp)

    feat_out = feat_full if (padded_b, feat_p) == (B, feat_dim) else feat_full[:B, :feat_dim]
    after_out = after_full if (padded_b, out_pp) == (B, out_dim) else after_full[:B, :out_dim]
    return feat_out, after_out


def init_params(key, in_dim, out_dim, hidden_mlp, feat_dim):
    """Deterministic synthetic parameters with PyTorch-Linear-like scaling.
    Weights are returned transposed: (in_features, out_features)."""
    k1, k2, k3, k4, k5 = jax.random.split(key, 5)

    def uinit(k, shape, fan_in):
        bound = 1.0 / jnp.sqrt(fan_in)
        return jax.random.uniform(k, shape, jnp.float32, -bound, bound)

    w1 = uinit(k1, (in_dim, hidden_mlp), in_dim)
    b1 = uinit(k2, (hidden_mlp,), in_dim)
    w2 = uinit(k3, (hidden_mlp, feat_dim), hidden_mlp)
    b2 = uinit(k4, (feat_dim,), hidden_mlp)

    # ProtoCLS: bias-free Linear(feat_dim, out_dim); weight_norm() in __init__
    # L2-normalizes each prototype (each column in the transposed layout).
    wp = uinit(k5, (feat_dim, out_dim), feat_dim)
    wp = wp / jnp.linalg.norm(wp, axis=0, keepdims=True)
    return w1, b1, w2, b2, wp


if __name__ == "__main__":
    # Small shapes consistent with the module's forward.
    B, IN_DIM, HIDDEN, FEAT_DIM, OUT_DIM = 8, 32, 64, 32, 16
    TEMP = 0.05

    key = jax.random.PRNGKey(0)
    kx, kp = jax.random.split(key)
    x = jax.random.normal(kx, (B, IN_DIM), jnp.float32)
    w1, b1, w2, b2, wp = init_params(kp, IN_DIM, OUT_DIM, HIDDEN, FEAT_DIM)

    before_feat, after_lincls = cls_forward(x, w1, b1, w2, b2, wp, TEMP)
    jax.block_until_ready((before_feat, after_lincls))

    # Sanity check against a plain-JAX f32 reference of the same math.
    # (Kernel uses bf16 MXU operands with f32 accumulation -> bf16-class error.)
    h_ref = jnp.maximum(x @ w1 + b1, 0.0)
    feat_ref = h_ref @ w2 + b2
    nrm = jnp.maximum(jnp.linalg.norm(feat_ref, axis=1, keepdims=True), 1e-12)
    after_ref = (feat_ref / nrm) @ wp / TEMP

    def max_rel_err(a, b):
        return float(jnp.max(jnp.abs(a - b)) / (jnp.max(jnp.abs(b)) + 1e-6))

    assert before_feat.shape == (B, FEAT_DIM)
    assert after_lincls.shape == (B, OUT_DIM)
    assert max_rel_err(before_feat, feat_ref) < 3e-2, max_rel_err(before_feat, feat_ref)
    assert max_rel_err(after_lincls, after_ref) < 3e-2, max_rel_err(after_lincls, after_ref)

    print("KERNEL_OK")
</pallas_src>

<mosaic_0001>
module attributes {stable_mosaic.version = 11 : i64} {
  func.func @_cls_kernel(%arg0: i32, %arg1: i32, %arg2: memref<16x128xbf16, #tpu.memory_space<vmem>>, %arg3: memref<128x128xbf16, #tpu.memory_space<vmem>>, %arg4: memref<1x128xf32, #tpu.memory_space<vmem>>, %arg5: memref<128x128xbf16, #tpu.memory_space<vmem>>, %arg6: memref<1x128xf32, #tpu.memory_space<vmem>>, %arg7: memref<128x128xbf16, #tpu.memory_space<vmem>>, %arg8: memref<16x128xf32, #tpu.memory_space<vmem>>, %arg9: memref<16x128xf32, #tpu.memory_space<vmem>>) attributes {dimension_semantics = [#tpu.dimension_semantics<parallel>, #tpu.dimension_semantics<arbitrary>], iteration_bounds = array<i64: 1, 1>, scalar_prefetch = 0 : i64, scratch_operands = 0 : i64, tpu.core_type = #tpu.core_type<tc>, window_params = [{transform_indices = @transform_0, window_bounds = array<i64: 16, 128>}, {pipeline_mode = #tpu.pipeline_mode<synchronous>, transform_indices = @transform_1, window_bounds = array<i64: 128, 128>}, {pipeline_mode = #tpu.pipeline_mode<synchronous>, transform_indices = @transform_2, window_bounds = array<i64: 1, 128>}, {pipeline_mode = #tpu.pipeline_mode<synchronous>, transform_indices = @transform_3, window_bounds = array<i64: 128, 128>}, {pipeline_mode = #tpu.pipeline_mode<synchronous>, transform_indices = @transform_4, window_bounds = array<i64: 1, 128>}, {pipeline_mode = #tpu.pipeline_mode<synchronous>, transform_indices = @transform_5, window_bounds = array<i64: 128, 128>}, {transform_indices = @transform_6, window_bounds = array<i64: 16, 128>}, {transform_indices = @transform_7, window_bounds = array<i64: 16, 128>}]} {
    %c0 = arith.constant 0 : index
    %c0_0 = arith.constant 0 : index
    %0 = vector.load %arg2[%c0, %c0_0] : memref<16x128xbf16, #tpu.memory_space<vmem>>, vector<16x128xbf16>
    %c0_1 = arith.constant 0 : index
    %c0_2 = arith.constant 0 : index
    %1 = vector.load %arg3[%c0_1, %c0_2] : memref<128x128xbf16, #tpu.memory_space<vmem>>, vector<128x128xbf16>
    %cst = arith.constant dense<0.000000e+00> : vector<16x128xf32>
    %2 = tpu.matmul %0, %1, %cst {dimension_numbers = #tpu.dot_dimension_numbers<[1], [0], [0], [1], [0, 0, 1, 1], [], []>} : vector<16x128xbf16>, vector<128x128xbf16>, vector<16x128xf32> -> vector<16x128xf32>
    %c0_3 = arith.constant 0 : index
    %c0_4 = arith.constant 0 : index
    %3 = vector.load %arg4[%c0_3, %c0_4] : memref<1x128xf32, #tpu.memory_space<vmem>>, vector<1x128xf32>
    %4 = vector.broadcast %3 : vector<1x128xf32> to vector<16x128xf32>
    %5 = arith.addf %2, %4 : vector<16x128xf32>
    %cst_5 = arith.constant 0.000000e+00 : f32
    %6 = vector.broadcast %cst_5 : f32 to vector<16x128xf32>
    %7 = arith.maximumf %5, %6 : vector<16x128xf32>
    %8 = arith.truncf %7 : vector<16x128xf32> to vector<16x128xbf16>
    %c0_6 = arith.constant 0 : index
    %c0_7 = arith.constant 0 : index
    %9 = vector.load %arg5[%c0_6, %c0_7] : memref<128x128xbf16, #tpu.memory_space<vmem>>, vector<128x128xbf16>
    %cst_8 = arith.constant dense<0.000000e+00> : vector<16x128xf32>
    %10 = tpu.matmul %8, %9, %cst_8 {dimension_numbers = #tpu.dot_dimension_numbers<[1], [0], [0], [1], [0, 0, 1, 1], [], []>} : vector<16x128xbf16>, vector<128x128xbf16>, vector<16x128xf32> -> vector<16x128xf32>
    %c0_9 = arith.constant 0 : index
    %c0_10 = arith.constant 0 : index
    %11 = vector.load %arg6[%c0_9, %c0_10] : memref<1x128xf32, #tpu.memory_space<vmem>>, vector<1x128xf32>
    %12 = vector.broadcast %11 : vector<1x128xf32> to vector<16x128xf32>
    %13 = arith.addf %10, %12 : vector<16x128xf32>
    %c0_11 = arith.constant 0 : index
    %c0_12 = arith.constant 0 : index
    %14 = vector.load %arg8[%c0_11, %c0_12] : memref<16x128xf32, #tpu.memory_space<vmem>>, vector<16x128xf32>
    tpu.vector_store %arg8[%c0_11, %c0_12], %13 {strides = array<i32>} : memref<16x128xf32, #tpu.memory_space<vmem>>, vector<16x128xf32>,
    %15 = arith.mulf %13, %13 : vector<16x128xf32>
    %cst_13 = arith.constant dense<0.000000e+00> : vector<16xf32>
    %16 = vector.multi_reduction <add>, %15, %cst_13 [1] : vector<16x128xf32> to vector<16xf32>
    %17 = vector.shape_cast %16 : vector<16xf32> to vector<16x1xf32>
    %cst_14 = arith.constant 1.000000e-24 : f32
    %18 = vector.broadcast %cst_14 : f32 to vector<16x1xf32>
    %19 = arith.maximumf %17, %18 : vector<16x1xf32>
    %20 = math.rsqrt %19 : vector<16x1xf32>
    %21 = vector.broadcast %20 : vector<16x1xf32> to vector<16x128xf32>
    %22 = arith.mulf %13, %21 : vector<16x128xf32>
    %23 = arith.truncf %22 : vector<16x128xf32> to vector<16x128xbf16>
    %c0_15 = arith.constant 0 : index
    %c0_16 = arith.constant 0 : index
    %24 = vector.load %arg7[%c0_15, %c0_16] : memref<128x128xbf16, #tpu.memory_space<vmem>>, vector<128x128xbf16>
    %cst_17 = arith.constant dense<0.000000e+00> : vector<16x128xf32>
    %25 = tpu.matmul %23, %24, %cst_17 {dimension_numbers = #tpu.dot_dimension_numbers<[1], [0], [0], [1], [0, 0, 1, 1], [], []>} : vector<16x128xbf16>, vector<128x128xbf16>, vector<16x128xf32> -> vector<16x128xf32>
    %c0_18 = arith.constant 0 : index
    %c0_19 = arith.constant 0 : index
    %26 = vector.load %arg9[%c0_18, %c0_19] : memref<16x128xf32, #tpu.memory_space<vmem>>, vector<16x128xf32>
    tpu.vector_store %arg9[%c0_18, %c0_19], %25 {strides = array<i32>} : memref<16x128xf32, #tpu.memory_space<vmem>>, vector<16x128xf32>,
    return
  }
  func.func @transform_0(%arg0: i32, %arg1: i32) -> (i32, i32) {
    %c0_i32 = arith.constant 0 : i32
    %c0_i32_0 = arith.constant 0 : i32
    return %arg0, %c0_i32 : i32, i32
  }
  func.func @transform_1(%arg0: i32, %arg1: i32) -> (i32, i32) {
    %c0_i32 = arith.constant 0 : i32
    %c0_i32_0 = arith.constant 0 : i32
    %c0_i32_1 = arith.constant 0 : i32
    return %c0_i32, %c0_i32_0 : i32, i32
  }
  func.func @transform_2(%arg0: i32, %arg1: i32) -> (i32, i32) {
    %c0_i32 = arith.constant 0 : i32
    %c0_i32_0 = arith.constant 0 : i32
    %c0_i32_1 = arith.constant 0 : i32
    return %c0_i32, %c0_i32_0 : i32, i32
  }
  func.func @transform_3(%arg0: i32, %arg1: i32) -> (i32, i32) {
    %c0_i32 = arith.constant 0 : i32
    %c0_i32_0 = arith.constant 0 : i32
    %c0_i32_1 = arith.constant 0 : i32
    return %c0_i32, %c0_i32_0 : i32, i32
  }
  func.func @transform_4(%arg0: i32, %arg1: i32) -> (i32, i32) {
    %c0_i32 = arith.constant 0 : i32
    %c0_i32_0 = arith.constant 0 : i32
    %c0_i32_1 = arith.constant 0 : i32
    return %c0_i32, %c0_i32_0 : i32, i32
  }
  func.func @transform_5(%arg0: i32, %arg1: i32) -> (i32, i32) {
    %c0_i32 = arith.constant 0 : i32
    %c0_i32_0 = arith.constant 0 : i32
    %c0_i32_1 = arith.constant 0 : i32
    return %c0_i32, %c0_i32_0 : i32, i32
  }
  func.func @transform_6(%arg0: i32, %arg1: i32) -> (i32, i32) {
    %c0_i32 = arith.constant 0 : i32
    %c0_i32_0 = arith.constant 0 : i32
    return %arg0, %c0_i32 : i32, i32
  }
  func.func @transform_7(%arg0: i32, %arg1: i32) -> (i32, i32) {
    %c0_i32 = arith.constant 0 : i32
    return %arg0, %arg1 : i32, i32
  }
}

</mosaic_0001>

<llo_original>
// kernel: tpu_custom_call.1
$region0: #{tpu_custom_call.1}
  #allocation0 [shape = 'u32[]', space=smem, size = 0x4, offset = 0x4, fixed_abs, tag = 'smem constant byte address 0x4 - core index']
  #allocation1 [shape = 'u32[144,128]{1,0:T(1,128)}', space=vmem, size = 0x12000, scoped, tag = 'internal scratch']
  %s0 = inlined_call_operand.hbm [shape: bf16[16,128], index: 0, kind: input, shape index: {}]
  %s1 = inlined_call_operand.hbm [shape: bf16[128,128], index: 1, kind: input, shape index: {}]
  %s2 = inlined_call_operand.vmem [shape: f32[1,128], index: 2, kind: input, shape index: {}]
  %s3 = inlined_call_operand.hbm [shape: bf16[128,128], index: 3, kind: input, shape index: {}]
  %s4 = inlined_call_operand.vmem [shape: f32[1,128], index: 4, kind: input, shape index: {}]
  %s5 = inlined_call_operand.hbm [shape: bf16[128,128], index: 5, kind: input, shape index: {}]
  %s6 = inlined_call_operand.hbm [shape: f32[16,128], index: 6, kind: output, shape index: {0}]
  %s7 = inlined_call_operand.hbm [shape: f32[16,128], index: 7, kind: output, shape index: {1}]
  %8 = xla_tuple %s6, %s7
  %s9 = sld [smem:[#allocation0]]
  $region58: #{tpu_custom_call.1} parent=0
    _
  %s11 = ssub.s32 1, %s9
  %s12 = scalar_select 0, %s11, %s9
  $region1: #{tpu_custom_call.1} parent=0
    #allocation2 [shape = 'u8[4096]{0}', space=vmem, size = 0x1000, scoped, tag = 'input window, operand 0, single buffered']
    #allocation3 [shape = 's32[1]{0}', space=sflag, size = 0x4, scoped, tag = 'scoped memory for tpu_custom_call.1']
    #allocation4 [shape = 's32[1]{0}', space=sflag, size = 0x4, scoped, tag = 'scoped memory for tpu_custom_call.1']
    #allocation5 [shape = 'u8[32768]{0}', space=vmem, size = 0x8000, scoped, tag = 'input window, operand 1, single buffered']
    #allocation6 [shape = 's32[1]{0}', space=sflag, size = 0x4, scoped, tag = 'scoped memory for tpu_custom_call.1']
    #allocation7 [shape = 'u8[32768]{0}', space=vmem, size = 0x8000, scoped, tag = 'input window, operand 3, single buffered']
    #allocation8 [shape = 'u8[32768]{0}', space=vmem, size = 0x8000, scoped, tag = 'input window, operand 5, single buffered']
    #allocation9 [shape = 's32[1]{0}', space=sflag, size = 0x4, scoped, tag = 'scoped memory for tpu_custom_call.1']
    #allocation10 [shape = 'u8[8192]{0}', space=vmem, size = 0x2000, scoped, tag = 'output window, operand 0, single buffered']
    #allocation11 [shape = 'u8[8192]{0}', space=vmem, size = 0x2000, scoped, tag = 'output window, operand 1, single buffered']
    #allocation12 [shape = 's32[1]{0}', space=sflag, size = 0x4, scoped, tag = 'scoped memory for tpu_custom_call.1']
    %13 = vsyncpa [#allocation3], 0
    %14 = vsyncpa [#allocation6], 0
    %15 = vsyncpa [#allocation9], 0
    %16 = vsyncpa [#allocation4], 0
    %17 = vsyncpa [#allocation12], 0
    // Predicated region
    $region2: #{tpu_custom_call.1} parent=1 // pred_check
      _
    $region3: #{tpu_custom_call.1} parent=1 // pred_check_branch
      %19 = sbr.rel (0) target = $region5
    $region4: #{tpu_custom_call.1} parent=1 // pred_region
      %s21 = ssub.s32 128, 128
      %22 = vsyncadd [#allocation3], %s21
      %s23 = sshll.u32 [#allocation2], 4
      %s24 = int_to_ptr.vmem [resolvable:$true] %s23
      %29 = dma.hbm_to_vmem [thread:$0]  %s0, 128, %s24, [#allocation3], 64, 64, 4
    $region5: #{tpu_custom_call.1} parent=1 // pred_fallthru
      _
    // Predicated region
    $region6: #{tpu_custom_call.1} parent=1 // pred_check
      _
    $region7: #{tpu_custom_call.1} parent=1 // pred_check_branch
      %31 = sbr.rel (0) target = $region9
    $region8: #{tpu_custom_call.1} parent=1 // pred_region
      %s33 = ssub.s32 1024, 1024
      %34 = vsyncadd [#allocation6], %s33
      %s35 = sshll.u32 [#allocation5], 4
      %s36 = int_to_ptr.vmem [resolvable:$true] %s35
      %41 = dma.hbm_to_vmem [thread:$0]  %s1, 1024, %s36, [#allocation6], 64, 64, 4
    $region9: #{tpu_custom_call.1} parent=1 // pred_fallthru
      _
    // Predicated region
    $region10: #{tpu_custom_call.1} parent=1 // pred_check
      _
    $region11: #{tpu_custom_call.1} parent=1 // pred_check_branch
      %43 = sbr.rel (0) target = $region13
    $region12: #{tpu_custom_call.1} parent=1 // pred_region
      _
    $region13: #{tpu_custom_call.1} parent=1 // pred_fallthru
      _
    // Predicated region
    $region14: #{tpu_custom_call.1} parent=1 // pred_check
      _
    $region15: #{tpu_custom_call.1} parent=1 // pred_check_branch
      %45 = sbr.rel (0) target = $region17
    $region16: #{tpu_custom_call.1} parent=1 // pred_region
      %s47 = ssub.s32 1024, 1024
      %48 = vsyncadd [#allocation6], %s47
      %s49 = sshll.u32 [#allocation7], 4
      %s50 = int_to_ptr.vmem [resolvable:$true] %s49
      %55 = dma.hbm_to_vmem [thread:$0]  %s3, 1024, %s50, [#allocation6], 64, 64, 4
    $region17: #{tpu_custom_call.1} parent=1 // pred_fallthru
      _
    // Predicated region
    $region18: #{tpu_custom_call.1} parent=1 // pred_check
      _
    $region19: #{tpu_custom_call.1} parent=1 // pred_check_branch
      %57 = sbr.rel (0) target = $region21
    $region20: #{tpu_custom_call.1} parent=1 // pred_region
      _
    $region21: #{tpu_custom_call.1} parent=1 // pred_fallthru
      _
    // Predicated region
    $region22: #{tpu_custom_call.1} parent=1 // pred_check
      _
    $region23: #{tpu_custom_call.1} parent=1 // pred_check_branch
      %59 = sbr.rel (0) target = $region25
    $region24: #{tpu_custom_call.1} parent=1 // pred_region
      %s61 = ssub.s32 1024, 1024
      %62 = vsyncadd [#allocation9], %s61
      %s63 = sshll.u32 [#allocation8], 4
      %s64 = int_to_ptr.vmem [resolvable:$true] %s63
      %69 = dma.hbm_to_vmem [thread:$0]  %s5, 1024, %s64, [#allocation9], 64, 64, 4
    $region25: #{tpu_custom_call.1} parent=1 // pred_fallthru
      _
    // Predicated region
    $region26: #{tpu_custom_call.1} parent=1 // pred_check
      _
    $region27: #{tpu_custom_call.1} parent=1 // pred_check_branch
      %71 = sbr.rel (0) target = $region29
    $region28: #{tpu_custom_call.1} parent=1 // pred_region
      %72 = dma.done [#allocation3], 128
    $region29: #{tpu_custom_call.1} parent=1 // pred_fallthru
      _
    // Predicated region
    $region30: #{tpu_custom_call.1} parent=1 // pred_check
      _
    $region31: #{tpu_custom_call.1} parent=1 // pred_check_branch
      %74 = sbr.rel (0) target = $region33
    $region32: #{tpu_custom_call.1} parent=1 // pred_region
      %75 = dma.done [#allocation6], 1024
    $region33: #{tpu_custom_call.1} parent=1 // pred_fallthru
      _
    // Predicated region
    $region34: #{tpu_custom_call.1} parent=1 // pred_check
      _
    $region35: #{tpu_custom_call.1} parent=1 // pred_check_branch
      %77 = sbr.rel (0) target = $region37
    $region36: #{tpu_custom_call.1} parent=1 // pred_region
      %78 = dma.done [#allocation6], 1024
    $region37: #{tpu_custom_call.1} parent=1 // pred_fallthru
      _
    // Predicated region
    $region38: #{tpu_custom_call.1} parent=1 // pred_check
      _
    $region39: #{tpu_custom_call.1} parent=1 // pred_check_branch
      %80 = sbr.rel (0) target = $region41
    $region40: #{tpu_custom_call.1} parent=1 // pred_region
      %81 = dma.done [#allocation9], 1024
    $region41: #{tpu_custom_call.1} parent=1 // pred_fallthru
      _
    %v83 = vld [vmem:[#allocation2] sm:$0xf]
    %v84 = vld [vmem:[#allocation2 + $0x4] sm:$0xf]
    %v85 = vld [vmem:[#allocation5] sm:$0xf]
    %v86 = vld [vmem:[#allocation5 + $0x4] sm:$0xf]
    %v87 = vld [vmem:[#allocation5 + $0x8] sm:$0xf]
    %v88 = vld [vmem:[#allocation5 + $0xc] sm:$0xf]
    %v89 = vld [vmem:[#allocation5 + $0x10] sm:$0xf]
    %v90 = vld [vmem:[#allocation5 + $0x14] sm:$0xf]
    %v91 = vld [vmem:[#allocation5 + $0x18] sm:$0xf]
    %v92 = vld [vmem:[#allocation5 + $0x1c] sm:$0xf]
    %v93 = vld [vmem:[#allocation5 + $0x20] sm:$0xf]
    %v94 = vld [vmem:[#allocation5 + $0x24] sm:$0xf]
    %v95 = vld [vmem:[#allocation5 + $0x28] sm:$0xf]
    %v96 = vld [vmem:[#allocation5 + $0x2c] sm:$0xf]
    %v97 = vld [vmem:[#allocation5 + $0x30] sm:$0xf]
    %v98 = vld [vmem:[#allocation5 + $0x34] sm:$0xf]
    %v99 = vld [vmem:[#allocation5 + $0x38] sm:$0xf]
    %v100 = vld [vmem:[#allocation5 + $0x3c] sm:$0xf]
    %v101 = vld [vmem:[%s2] sm:$0x1]
    %v103 = vlaneseq
    %v104 = vshrl.u32 %v103, 7
    %v105 = vsub.s32 0, %v104
    %v106 = vrot.slane %v101, %v105
    %v110 = vunpack.c.l.b16 %v83
    %v111 = vunpack.c.l.b16 %v84
    %v112 = vpack.c.b16 %v111, %v110
    %v130 = vunpack.c.l.b16 %v85
    %v131 = vunpack.c.l.b16 %v86
    %v132 = vunpack.c.l.b16 %v87
    %v133 = vunpack.c.l.b16 %v88
    %v134 = vunpack.c.l.b16 %v89
    %v135 = vunpack.c.l.b16 %v90
    %v136 = vunpack.c.l.b16 %v91
    %v137 = vunpack.c.l.b16 %v92
    %v138 = vunpack.c.l.b16 %v93
    %v139 = vunpack.c.l.b16 %v94
    %v140 = vunpack.c.l.b16 %v95
    %v141 = vunpack.c.l.b16 %v96
    %v142 = vunpack.c.l.b16 %v97
    %v143 = vunpack.c.l.b16 %v98
    %v144 = vunpack.c.l.b16 %v99
    %v145 = vunpack.c.l.b16 %v100
    %v146 = vpack.c.b16 %v131, %v130
    %v147 = vpack.c.b16 %v133, %v132
    %v148 = vpack.c.b16 %v135, %v134
    %v149 = vpack.c.b16 %v137, %v136
    %v150 = vpack.c.b16 %v139, %v138
    %v151 = vpack.c.b16 %v141, %v140
    %v152 = vpack.c.b16 %v143, %v142
    %v153 = vpack.c.b16 %v145, %v144
    %162 = vmatprep.subr.bf16.mxu0 0
    %163 = vmatpush1.bf16.msra.mxu0 %v153
    %164 = vmatprep.subr.bf16.mxu0 0
    %165 = vmatpush1.bf16.msra.mxu0 %v152
    %166 = vmatprep.subr.bf16.mxu0 0
    %167 = vmatpush1.bf16.msra.mxu0 %v151
    %168 = vmatprep.subr.bf16.mxu0 0
    %169 = vmatpush1.bf16.msra.mxu0 %v150
    %170 = vmatprep.subr.bf16.mxu0 0
    %171 = vmatpush1.bf16.msra.mxu0 %v149
    %172 = vmatprep.subr.bf16.mxu0 0
    %173 = vmatpush1.bf16.msra.mxu0 %v148
    %174 = vmatprep.subr.bf16.mxu0 0
    %175 = vmatpush1.bf16.msra.mxu0 %v147
    %176 = vmatprep.subr.bf16.mxu0 0
    %177 = vmatpush1.bf16.msra.mxu0 %v146
    %178 = vmatprep.subr.bf16.mxu0 0
    %179 = vmatpush2.bf16.msra.mxu0 0
    %180 = vmatprep.subr.bf16.mxu0 0
    %181 = vmatpush2.bf16.msra.mxu0 0
    %182 = vmatprep.subr.bf16.mxu0 0
    %183 = vmatpush2.bf16.msra.mxu0 0
    %184 = vmatprep.subr.bf16.mxu0 0
    %185 = vmatpush2.bf16.msra.mxu0 0
    %186 = vmatprep.subr.bf16.mxu0 0
    %187 = vmatpush2.bf16.msra.mxu0 0
    %188 = vmatprep.subr.bf16.mxu0 0
    %189 = vmatpush2.bf16.msra.mxu0 0
    %190 = vmatprep.subr.bf16.mxu0 0
    %191 = vmatpush2.bf16.msra.mxu0 0
    %192 = vmatprep.subr.bf16.mxu0 0
    %193 = vmatpush2.bf16.msra.mxu0 0
    %194 = vmatprep.mubr.bf16.mxu0 0
    %195 = vmatmul.mubr.bf16.gmra.mxu0 %v112
    %v196 = vpop.f32.mrf.mxu0
    %v197 = vadd.f32 %v106, %v196
    %v198 = vpop.f32.mrf.mxu0
    %v199 = vpop.f32.mrf.mxu0
    %v200 = vadd.f32 %v106, %v199
    %v201 = vpop.f32.mrf.mxu0
    %202 = vdwg.mxu0
    %v203 = vmax.f32 %v197, 0.0
    %v204 = vmax.f32 %v200, 0.0
    %v205 = vpack.c.bf16 %v204, %v203
    %v206 = vld [vmem:[#allocation7] sm:$0xf]
    %v207 = vld [vmem:[#allocation7 + $0x4] sm:$0xf]
    %v208 = vld [vmem:[#allocation7 + $0x8] sm:$0xf]
    %v209 = vld [vmem:[#allocation7 + $0xc] sm:$0xf]
    %v210 = vld [vmem:[#allocation7 + $0x10] sm:$0xf]
    %v211 = vld [vmem:[#allocation7 + $0x14] sm:$0xf]
    %v212 = vld [vmem:[#allocation7 + $0x18] sm:$0xf]
    %v213 = vld [vmem:[#allocation7 + $0x1c] sm:$0xf]
    %v214 = vld [vmem:[#allocation7 + $0x20] sm:$0xf]
    %v215 = vld [vmem:[#allocation7 + $0x24] sm:$0xf]
    %v216 = vld [vmem:[#allocation7 + $0x28] sm:$0xf]
    %v217 = vld [vmem:[#allocation7 + $0x2c] sm:$0xf]
    %v218 = vld [vmem:[#allocation7 + $0x30] sm:$0xf]
    %v219 = vld [vmem:[#allocation7 + $0x34] sm:$0xf]
    %v220 = vld [vmem:[#allocation7 + $0x38] sm:$0xf]
    %v221 = vld [vmem:[#allocation7 + $0x3c] sm:$0xf]
    %v222 = vld [vmem:[%s4] sm:$0x1]
    %v224 = vlaneseq
    %v225 = vshrl.u32 %v224, 7
    %v226 = vsub.s32 0, %v225
    %v227 = vrot.slane %v222, %v226
    %v245 = vunpack.c.l.b16 %v206
    %v246 = vunpack.c.l.b16 %v207
    %v247 = vunpack.c.l.b16 %v208
    %v248 = vunpack.c.l.b16 %v209
    %v249 = vunpack.c.l.b16 %v210
    %v250 = vunpack.c.l.b16 %v211
    %v251 = vunpack.c.l.b16 %v212
    %v252 = vunpack.c.l.b16 %v213
    %v253 = vunpack.c.l.b16 %v214
    %v254 = vunpack.c.l.b16 %v215
    %v255 = vunpack.c.l.b16 %v216
    %v256 = vunpack.c.l.b16 %v217
    %v257 = vunpack.c.l.b16 %v218
    %v258 = vunpack.c.l.b16 %v219
    %v259 = vunpack.c.l.b16 %v220
    %v260 = vunpack.c.l.b16 %v221
    %v261 = vpack.c.b16 %v246, %v245
    %v262 = vpack.c.b16 %v248, %v247
    %v263 = vpack.c.b16 %v250, %v249
    %v264 = vpack.c.b16 %v252, %v251
    %v265 = vpack.c.b16 %v254, %v253
    %v266 = vpack.c.b16 %v256, %v255
    %v267 = vpack.c.b16 %v258, %v257
    %v268 = vpack.c.b16 %v260, %v259
    %277 = vmatprep.subr.bf16.mxu0 0
    %278 = vmatpush1.bf16.msra.mxu0 %v268
    %279 = vmatprep.subr.bf16.mxu0 0
    %280 = vmatpush1.bf16.msra.mxu0 %v267
    %281 = vmatprep.subr.bf16.mxu0 0
    %282 = vmatpush1.bf16.msra.mxu0 %v266
    %283 = vmatprep.subr.bf16.mxu0 0
    %284 = vmatpush1.bf16.msra.mxu0 %v265
    %285 = vmatprep.subr.bf16.mxu0 0
    %286 = vmatpush1.bf16.msra.mxu0 %v264
    %287 = vmatprep.subr.bf16.mxu0 0
    %288 = vmatpush1.bf16.msra.mxu0 %v263
    %289 = vmatprep.subr.bf16.mxu0 0
    %290 = vmatpush1.bf16.msra.mxu0 %v262
    %291 = vmatprep.subr.bf16.mxu0 0
    %292 = vmatpush1.bf16.msra.mxu0 %v261
    %293 = vmatprep.subr.bf16.mxu0 0
    %294 = vmatpush2.bf16.msra.mxu0 0
    %295 = vmatprep.subr.bf16.mxu0 0
    %296 = vmatpush2.bf16.msra.mxu0 0
    %297 = vmatprep.subr.bf16.mxu0 0
    %298 = vmatpush2.bf16.msra.mxu0 0
    %299 = vmatprep.subr.bf16.mxu0 0
    %300 = vmatpush2.bf16.msra.mxu0 0
    %301 = vmatprep.subr.bf16.mxu0 0
    %302 = vmatpush2.bf16.msra.mxu0 0
    %303 = vmatprep.subr.bf16.mxu0 0
    %304 = vmatpush2.bf16.msra.mxu0 0
    %305 = vmatprep.subr.bf16.mxu0 0
    %306 = vmatpush2.bf16.msra.mxu0 0
    %307 = vmatprep.subr.bf16.mxu0 0
    %308 = vmatpush2.bf16.msra.mxu0 0
    %309 = vmatprep.mubr.bf16.mxu0 0
    %310 = vmatmul.mubr.bf16.gmra.mxu0 %v205
    %v311 = vpop.f32.mrf.mxu0
    %v312 = vadd.f32 %v227, %v311
    %v313 = vpop.f32.mrf.mxu0
    %v314 = vpop.f32.mrf.mxu0
    %v315 = vadd.f32 %v227, %v314
    %v316 = vpop.f32.mrf.mxu0
    %317 = vdwg.mxu0
    %318 = vst [vmem:[#allocation10] sm:$0xff] %v312
    %319 = vst [vmem:[#allocation10 + $0x8] sm:$0xff] %v315
    %v320 = vmul.f32 %v312, %v312
    %v321 = vmul.f32 %v315, %v315
    %322 = vadd.xlane.f32.xlu0 %v320
    %v323 = vpop.xlane.xlu0 %322
    %324 = vadd.xlane.f32.xlu0 %v321
    %v325 = vpop.xlane.xlu0 %324
    %v326 = vmax.f32 %v323, 1e-24
    %v327 = vmax.f32 %v325, 1e-24
    %v328 = vrsqrt.pop %v326
    %v329 = vrsqrt.pop %v327
    %v330 = vmul.f32 %v312, %v328
    %v331 = vmul.f32 %v315, %v329
    %v332 = vpack.c.bf16 %v331, %v330
    %v333 = vld [vmem:[#allocation8] sm:$0xf]
    %v334 = vld [vmem:[#allocation8 + $0x4] sm:$0xf]
    %v335 = vld [vmem:[#allocation8 + $0x8] sm:$0xf]
    %v336 = vld [vmem:[#allocation8 + $0xc] sm:$0xf]
    %v337 = vld [vmem:[#allocation8 + $0x10] sm:$0xf]
    %v338 = vld [vmem:[#allocation8 + $0x14] sm:$0xf]
    %v339 = vld [vmem:[#allocation8 + $0x18] sm:$0xf]
    %v340 = vld [vmem:[#allocation8 + $0x1c] sm:$0xf]
    %v341 = vld [vmem:[#allocation8 + $0x20] sm:$0xf]
    %v342 = vld [vmem:[#allocation8 + $0x24] sm:$0xf]
    %v343 = vld [vmem:[#allocation8 + $0x28] sm:$0xf]
    %v344 = vld [vmem:[#allocation8 + $0x2c] sm:$0xf]
    %v345 = vld [vmem:[#allocation8 + $0x30] sm:$0xf]
    %v346 = vld [vmem:[#allocation8 + $0x34] sm:$0xf]
    %v347 = vld [vmem:[#allocation8 + $0x38] sm:$0xf]
    %v348 = vld [vmem:[#allocation8 + $0x3c] sm:$0xf]
    %v365 = vunpack.c.l.b16 %v333
    %v366 = vunpack.c.l.b16 %v334
    %v367 = vunpack.c.l.b16 %v335
    %v368 = vunpack.c.l.b16 %v336
    %v369 = vunpack.c.l.b16 %v337
    %v370 = vunpack.c.l.b16 %v338
    %v371 = vunpack.c.l.b16 %v339
    %v372 = vunpack.c.l.b16 %v340
    %v373 = vunpack.c.l.b16 %v341
    %v374 = vunpack.c.l.b16 %v342
    %v375 = vunpack.c.l.b16 %v343
    %v376 = vunpack.c.l.b16 %v344
    %v377 = vunpack.c.l.b16 %v345
    %v378 = vunpack.c.l.b16 %v346
    %v379 = vunpack.c.l.b16 %v347
    %v380 = vunpack.c.l.b16 %v348
    %v381 = vpack.c.b16 %v366, %v365
    %v382 = vpack.c.b16 %v368, %v367
    %v383 = vpack.c.b16 %v370, %v369
    %v384 = vpack.c.b16 %v372, %v371
    %v385 = vpack.c.b16 %v374, %v373
    %v386 = vpack.c.b16 %v376, %v375
    %v387 = vpack.c.b16 %v378, %v377
    %v388 = vpack.c.b16 %v380, %v379
    %397 = vmatprep.subr.bf16.mxu0 0
    %398 = vmatpush1.bf16.msra.mxu0 %v388
    %399 = vmatprep.subr.bf16.mxu0 0
    %400 = vmatpush1.bf16.msra.mxu0 %v387
    %401 = vmatprep.subr.bf16.mxu0 0
    %402 = vmatpush1.bf16.msra.mxu0 %v386
    %403 = vmatprep.subr.bf16.mxu0 0
    %404 = vmatpush1.bf16.msra.mxu0 %v385
    %405 = vmatprep.subr.bf16.mxu0 0
    %406 = vmatpush1.bf16.msra.mxu0 %v384
    %407 = vmatprep.subr.bf16.mxu0 0
    %408 = vmatpush1.bf16.msra.mxu0 %v383
    %409 = vmatprep.subr.bf16.mxu0 0
    %410 = vmatpush1.bf16.msra.mxu0 %v382
    %411 = vmatprep.subr.bf16.mxu0 0
    %412 = vmatpush1.bf16.msra.mxu0 %v381
    %413 = vmatprep.subr.bf16.mxu0 0
    %414 = vmatpush2.bf16.msra.mxu0 0
    %415 = vmatprep.subr.bf16.mxu0 0
    %416 = vmatpush2.bf16.msra.mxu0 0
    %417 = vmatprep.subr.bf16.mxu0 0
    %418 = vmatpush2.bf16.msra.mxu0 0
    %419 = vmatprep.subr.bf16.mxu0 0
    %420 = vmatpush2.bf16.msra.mxu0 0
    %421 = vmatprep.subr.bf16.mxu0 0
    %422 = vmatpush2.bf16.msra.mxu0 0
    %423 = vmatprep.subr.bf16.mxu0 0
    %424 = vmatpush2.bf16.msra.mxu0 0
    %425 = vmatprep.subr.bf16.mxu0 0
    %426 = vmatpush2.bf16.msra.mxu0 0
    %427 = vmatprep.subr.bf16.mxu0 0
    %428 = vmatpush2.bf16.msra.mxu0 0
    %429 = vmatprep.mubr.bf16.mxu0 0
    %430 = vmatmul.mubr.bf16.gmra.mxu0 %v332
    %v431 = vpop.f32.mrf.mxu0
    %v432 = vadd.f32 0.0, %v431
    %v433 = vpop.f32.mrf.mxu0
    %v434 = vpop.f32.mrf.mxu0
    %v435 = vadd.f32 0.0, %v434
    %v436 = vpop.f32.mrf.mxu0
    %437 = vdwg.mxu0
    %438 = vst [vmem:[#allocation11] sm:$0xff] %v432
    %439 = vst [vmem:[#allocation11 + $0x8] sm:$0xff] %v435
    // Predicated region
    $region42: #{tpu_custom_call.1} parent=1 // pred_check
      _
    $region43: #{tpu_custom_call.1} parent=1 // pred_check_branch
      %441 = sbr.rel (0) target = $region45
    $region44: #{tpu_custom_call.1} parent=1 // pred_region
      %s443 = ssub.s32 256, 256
      %444 = vsyncadd [#allocation4], %s443
      %s445 = sshll.u32 [#allocation10], 4
      %s446 = int_to_ptr.vmem [resolvable:$true] %s445
      %451 = dma.vmem_to_hbm [thread:$0]  %s446, 256, %s6, [#allocation4], 128, 128, 8
    $region45: #{tpu_custom_call.1} parent=1 // pred_fallthru
      _
    // Predicated region
    $region46: #{tpu_custom_call.1} parent=1 // pred_check
      _
    $region47: #{tpu_custom_call.1} parent=1 // pred_check_branch
      %453 = sbr.rel (0) target = $region49
    $region48: #{tpu_custom_call.1} parent=1 // pred_region
      %s455 = ssub.s32 256, 256
      %456 = vsyncadd [#allocation12], %s455
      %s457 = sshll.u32 [#allocation11], 4
      %s458 = int_to_ptr.vmem [resolvable:$true] %s457
      %463 = dma.vmem_to_hbm [thread:$0]  %s458, 256, %s7, [#allocation12], 128, 128, 8
    $region49: #{tpu_custom_call.1} parent=1 // pred_fallthru
      _
    // Predicated region
    $region50: #{tpu_custom_call.1} parent=1 // pred_check
      _
    $region51: #{tpu_custom_call.1} parent=1 // pred_check_branch
      %465 = sbr.rel (0) target = $region53
    $region52: #{tpu_custom_call.1} parent=1 // pred_region
      %466 = dma.done [#allocation4], 256
    $region53: #{tpu_custom_call.1} parent=1 // pred_fallthru
      _
    // Predicated region
    $region54: #{tpu_custom_call.1} parent=1 // pred_check
      _
    $region55: #{tpu_custom_call.1} parent=1 // pred_check_branch
      %468 = sbr.rel (0) target = $region57
    $region56: #{tpu_custom_call.1} parent=1 // pred_region
      %469 = dma.done [#allocation12], 256
    $region57: #{tpu_custom_call.1} parent=1 // pred_fallthru
      _
    %470 = vsyncpa [#allocation3], 1
    %471 = vsyncpa [#allocation6], 1
    %472 = vsyncpa [#allocation9], 1
    %473 = vsyncpa [#allocation4], 1
    %474 = vsyncpa [#allocation12], 1

</llo_original>
